<compile_context>
chip_gen: v7x
topology: tpu7x:2x2x1
jax: 0.10.0
libtpu: 0.0.40
codegen_flags: <defaults>
</compile_context>

<pallas_src>
import functools

import jax
import jax.numpy as jnp
from jax.experimental import pallas as pl
from jax.experimental.pallas import tpu as pltpu


# ---------------------------------------------------------------------------
# Pallas kernel
# ---------------------------------------------------------------------------
def _matmul_bias_kernel(x_ref, w_ref, b_ref, o_ref, *, apply_relu, n_k):
    """o = relu?(x @ w + b).  Grid = (M tiles, N tiles, K tiles), K innermost.

    When n_k > 1 the output block (constant over the K axis, hence VMEM-resident)
    doubles as the f32 accumulator -- no separate scratch buffer.
    """
    partial = jnp.dot(x_ref[...], w_ref[...], preferred_element_type=jnp.float32)

    if n_k == 1:
        out = partial + b_ref[...].astype(jnp.float32)
        if apply_relu:
            out = jnp.maximum(out, 0.0)
        o_ref[...] = out.astype(o_ref.dtype)
    else:
        k = pl.program_id(2)

        @pl.when(k == 0)
        def _():
            o_ref[...] = jnp.broadcast_to(b_ref[...].astype(jnp.float32),
                                          o_ref.shape)

        o_ref[...] += partial

        if apply_relu:
            @pl.when(k == n_k - 1)
            def _():
                o_ref[...] = jnp.maximum(o_ref[...], 0.0)


# ---------------------------------------------------------------------------
# Wrapper around pallas_call
# ---------------------------------------------------------------------------
def _pick_tile(dim, target, quantum):
    """Largest tile <= target dividing dim (multiple of quantum), else full dim."""
    if dim <= target:
        return dim
    best = None
    t = quantum
    while t <= target:
        if dim % t == 0:
            best = t
        t += quantum
    return best if best is not None else dim


def matmul_bias(x, w, b, *, apply_relu, out_dtype=jnp.float32):
    M, K = x.shape
    K2, N = w.shape
    assert K == K2, (K, K2)
    out_dtype = jnp.dtype(out_dtype)

    tm = _pick_tile(M, 512, 16)     # 16-multiple keeps bf16 sublane packing happy
    tn = _pick_tile(N, 512, 128)
    # K tile from a ~4 MB-per-buffer budget: double-buffered weight slabs stay well
    # inside v7x's 64 MiB VMEM while keeping big streaming DMAs on v5e/v6e.
    tk_target = max(128, (4 << 20) // (tn * w.dtype.itemsize))
    tk = _pick_tile(K, tk_target, 128)
    n_k = K // tk
    if n_k > 1:
        # output block is the K accumulator -> must be f32
        assert out_dtype == jnp.dtype(jnp.float32)

    kernel = functools.partial(_matmul_bias_kernel,
                               apply_relu=apply_relu, n_k=n_k)
    return pl.pallas_call(
        kernel,
        out_shape=jax.ShapeDtypeStruct((M, N), out_dtype),
        grid_spec=pltpu.PrefetchScalarGridSpec(
            num_scalar_prefetch=0,
            grid=(M // tm, N // tn, n_k),
            in_specs=[
                pl.BlockSpec((tm, tk), lambda i, j, k: (i, k)),
                pl.BlockSpec((tk, tn), lambda i, j, k: (k, j)),
                pl.BlockSpec((1, tn), lambda i, j, k: (0, j)),
            ],
            out_specs=pl.BlockSpec((tm, tn), lambda i, j, k: (i, j)),
        ),
        compiler_params=pltpu.CompilerParams(
            dimension_semantics=("parallel", "parallel", "arbitrary"),
            vmem_limit_bytes=32 << 20,
        ),
    )(x, w, b.reshape(1, N))


# ---------------------------------------------------------------------------
# Glue (patch extraction / pooling / reshapes) in plain JAX
# ---------------------------------------------------------------------------
def im2col_3x3_same(x_nhwc):
    """3x3, stride 1, padding 1 patches: (B, H, W, C) -> (B, H, W, 9*C) (bf16)."""
    B, H, W, C = x_nhwc.shape
    xp = jnp.pad(x_nhwc, ((0, 0), (1, 1), (1, 1), (0, 0)))
    patches = [xp[:, dy:dy + H, dx:dx + W, :]
               for dy in range(3) for dx in range(3)]
    return jnp.concatenate(patches, axis=-1)


def mnist_forward(x_nchw, params):
    B = x_nchw.shape[0]
    assert x_nchw.shape[1:] == (1, 28, 28)
    x = jnp.transpose(x_nchw, (0, 2, 3, 1)).astype(jnp.bfloat16)  # NHWC bf16

    # --- conv1: Conv2d(1, 32, 3, 1, 1) + ReLU (K=9 im2col matmul; tiny & mem-bound) ---
    p1 = im2col_3x3_same(x).reshape(B * 28 * 28, 9)
    h1 = matmul_bias(p1, params["wc1"], params["bc1"],
                     apply_relu=True, out_dtype=jnp.bfloat16)
    h1 = h1.reshape(B, 28, 28, 32)

    # --- conv2: Conv2d(32, 64, 3, 1, 1) + ReLU ---
    # TODO(synk): im2col is still materialized in HBM (bf16); fusing the 3x3 window
    # gather into the matmul kernel via haloed NHWC tiles would cut conv2 input traffic ~9x.
    p2 = im2col_3x3_same(h1).reshape(B * 28 * 28, 9 * 32)
    h2 = matmul_bias(p2, params["wc2"], params["bc2"],
                     apply_relu=True, out_dtype=jnp.bfloat16)
    h2 = h2.reshape(B, 28, 28, 64)

    # --- MaxPool2d(2, 2): fused strided maxima, single pass over h2 (XLA glue) ---
    pooled = jnp.maximum(
        jnp.maximum(h2[:, 0::2, 0::2, :], h2[:, 0::2, 1::2, :]),
        jnp.maximum(h2[:, 1::2, 0::2, :], h2[:, 1::2, 1::2, :]))  # (B, 14, 14, 64)

    # --- flatten in NHWC order; w1 rows were permuted from PyTorch's (C,H,W) order at
    #     init, so no NHWC->NCHW transpose pass is needed here ---
    flat = pooled.reshape(B, 14 * 14 * 64)

    # --- dense1: Linear(12544, 1024) + ReLU (K-tiled, f32 accumulate in output block) ---
    d1 = matmul_bias(flat, params["w1"], params["b1"], apply_relu=True)

    # TODO(synk): Dropout(p=0.2) applied as identity (eval-mode semantics); no RNG mask.

    # --- dense2: Linear(1024, 10) ---
    logits = matmul_bias(d1.astype(jnp.bfloat16), params["w2"], params["b2"],
                         apply_relu=False)
    return logits


# ---------------------------------------------------------------------------
# Params
# ---------------------------------------------------------------------------
def _hwc_from_chw_rows(w_chw_rows, H=14, W=14, C=64):
    """Permute Linear weight rows from PyTorch flatten order (C,H,W) to (H,W,C)."""
    idx = jnp.arange(H * W * C)
    h = idx // (W * C)
    w = (idx // C) % W
    c = idx % C
    return w_chw_rows[c * (H * W) + h * W + w, :]


def init_params(key):
    ks = jax.random.split(key, 8)

    def wmat(k, shape, fan_in):
        return (jax.random.normal(k, shape, jnp.float32) /
                jnp.sqrt(jnp.float32(fan_in))).astype(jnp.bfloat16)

    def bvec(k, n):
        return (0.1 * jax.random.normal(k, (n,), jnp.float32)).astype(jnp.float32)

    # NOTE: conv weights are stored as (9*C_in, C_out) im2col matrices in (ky, kx, C_in)
    # row order; dense1 is generated in PyTorch (C,H,W)-row order and permuted once to
    # (H,W,C). Porting trained PyTorch weights requires the same reorderings.
    w1_torch = wmat(ks[4], (14 * 14 * 64, 1024), 14 * 14 * 64)
    return {
        "wc1": wmat(ks[0], (9 * 1, 32), 9 * 1),
        "bc1": bvec(ks[1], 32),
        "wc2": wmat(ks[2], (9 * 32, 64), 9 * 32),
        "bc2": bvec(ks[3], 64),
        "w1": _hwc_from_chw_rows(w1_torch),
        "b1": bvec(ks[5], 1024),
        "w2": wmat(ks[6], (1024, 10), 1024),
        "b2": bvec(ks[7], 10),
    }


if __name__ == "__main__":
    key = jax.random.PRNGKey(0)
    kx, kp = jax.random.split(key)
    # 28x28 spatial is required by the module's hard-coded 14*14*64 flatten.
    x = jax.random.normal(kx, (2, 1, 28, 28), jnp.float32)
    params = init_params(kp)

    out = jax.block_until_ready(mnist_forward(x, params))
    assert out.shape == (2, 10) and out.dtype == jnp.float32
    assert bool(jnp.all(jnp.isfinite(out)))
    print("KERNEL_OK")
</pallas_src>

<mosaic_0001>
module attributes {stable_mosaic.version = 11 : i64} {
  func.func @_matmul_bias_kernel(%arg0: i32, %arg1: i32, %arg2: i32, %arg3: memref<224x9xbf16, #tpu.memory_space<vmem>>, %arg4: memref<9x32xbf16, #tpu.memory_space<vmem>>, %arg5: memref<1x32xf32, #tpu.memory_space<vmem>>, %arg6: memref<224x32xbf16, #tpu.memory_space<vmem>>) attributes {dimension_semantics = [#tpu.dimension_semantics<parallel>, #tpu.dimension_semantics<parallel>, #tpu.dimension_semantics<arbitrary>], iteration_bounds = array<i64: 7, 1, 1>, scalar_prefetch = 0 : i64, scratch_operands = 0 : i64, tpu.core_type = #tpu.core_type<tc>, window_params = [{transform_indices = @transform_0, window_bounds = array<i64: 224, 9>}, {transform_indices = @transform_1, window_bounds = array<i64: 9, 32>}, {transform_indices = @transform_2, window_bounds = array<i64: 1, 32>}, {transform_indices = @transform_3, window_bounds = array<i64: 224, 32>}]} {
    %c0 = arith.constant 0 : index
    %c0_0 = arith.constant 0 : index
    %0 = vector.load %arg3[%c0, %c0_0] : memref<224x9xbf16, #tpu.memory_space<vmem>>, vector<224x9xbf16>
    %c0_1 = arith.constant 0 : index
    %c0_2 = arith.constant 0 : index
    %1 = vector.load %arg4[%c0_1, %c0_2] : memref<9x32xbf16, #tpu.memory_space<vmem>>, vector<9x32xbf16>
    %cst = arith.constant dense<0.000000e+00> : vector<224x32xf32>
    %2 = tpu.matmul %0, %1, %cst {dimension_numbers = #tpu.dot_dimension_numbers<[1], [0], [0], [1], [0, 0, 1, 1], [], []>} : vector<224x9xbf16>, vector<9x32xbf16>, vector<224x32xf32> -> vector<224x32xf32>
    %c0_3 = arith.constant 0 : index
    %c0_4 = arith.constant 0 : index
    %3 = vector.load %arg5[%c0_3, %c0_4] : memref<1x32xf32, #tpu.memory_space<vmem>>, vector<1x32xf32>
    %4 = vector.broadcast %3 : vector<1x32xf32> to vector<224x32xf32>
    %5 = arith.addf %2, %4 : vector<224x32xf32>
    %cst_5 = arith.constant 0.000000e+00 : f32
    %6 = vector.broadcast %cst_5 : f32 to vector<224x32xf32>
    %7 = arith.maximumf %5, %6 : vector<224x32xf32>
    %8 = arith.truncf %7 : vector<224x32xf32> to vector<224x32xbf16>
    %c0_6 = arith.constant 0 : index
    %c0_7 = arith.constant 0 : index
    %9 = vector.load %arg6[%c0_6, %c0_7] : memref<224x32xbf16, #tpu.memory_space<vmem>>, vector<224x32xbf16>
    tpu.vector_store %arg6[%c0_6, %c0_7], %8 {strides = array<i32>} : memref<224x32xbf16, #tpu.memory_space<vmem>>, vector<224x32xbf16>,
    return
  }
  func.func @transform_0(%arg0: i32, %arg1: i32, %arg2: i32) -> (i32, i32) {
    %c0_i32 = arith.constant 0 : i32
    return %arg0, %arg2 : i32, i32
  }
  func.func @transform_1(%arg0: i32, %arg1: i32, %arg2: i32) -> (i32, i32) {
    %c0_i32 = arith.constant 0 : i32
    return %arg2, %arg1 : i32, i32
  }
  func.func @transform_2(%arg0: i32, %arg1: i32, %arg2: i32) -> (i32, i32) {
    %c0_i32 = arith.constant 0 : i32
    %c0_i32_0 = arith.constant 0 : i32
    return %c0_i32, %arg1 : i32, i32
  }
  func.func @transform_3(%arg0: i32, %arg1: i32, %arg2: i32) -> (i32, i32) {
    %c0_i32 = arith.constant 0 : i32
    return %arg0, %arg1 : i32, i32
  }
}

</mosaic_0001>

<llo_original>
// kernel: tpu_custom_call.1
$region0: #{tpu_custom_call.1}
  #allocation0 [shape = 'u32[]', space=smem, size = 0x4, offset = 0x4, fixed_abs, tag = 'smem constant byte address 0x4 - core index']
  #allocation1 [shape = 'u32[144,128]{1,0:T(1,128)}', space=vmem, size = 0x12000, scoped, tag = 'internal scratch']
  %s0 = inlined_call_operand.vmem [shape: bf16[1568,9], index: 0, kind: input, shape index: {}]
  %s1 = inlined_call_operand.vmem [shape: bf16[9,32], index: 1, kind: input, shape index: {}]
  %s2 = inlined_call_operand.vmem [shape: f32[1,32], index: 2, kind: input, shape index: {}]
  %s3 = inlined_call_operand.vmem [shape: bf16[1568,32], index: 3, kind: output, shape index: {}]
  %s4 = sld [smem:[#allocation0]]
  $region45: #{tpu_custom_call.1} parent=0
    _
  %s6 = ssub.s32 1, %s4
  %s7 = scalar_select 0, %s6, %s4
  loop: start=0, step=1, limit=9
  $region2: #{tpu_custom_call.1} parent=0 // loop_pre_header
    _
  $region3: #{tpu_custom_call.1} parent=0 // loop_header
    %s9 = sphi 0, %s13
    %p10 = scmp.ge.s32.totalorder %s9, 9
    %s16 = sphi 0, %s35
    %s17 = sphi 0, %s31
    %s18 = sphi 0, %s27
    %s19 = sphi 0, %s16
    %s20 = sphi 0, %s17
    %s21 = sphi 0, %s18
    %s22 = sphi 0, %s19
    %s23 = sphi 0, %s20
    %s24 = sphi 0, %s21
    %s40 = sphi 0, %s42
    %s43 = sphi 0, %s40
    %s44 = sphi 0, %s43
    %s60 = sphi 0, %s44
    %s68 = sphi 0, %s70
    %s71 = sphi 0, %s68
    %s72 = sphi 0, %s71
    %s88 = sphi 0, %s72
    %s94 = sphi 0, %s96
    %s97 = sphi 0, %s94
    %s98 = sphi 0, %s97
    %s114 = sphi 0, %s98
    %s122 = sphi 0, %s124
    %s125 = sphi 0, %s122
    %s126 = sphi 0, %s125
    %s142 = sphi 0, %s126
  $region4: #{tpu_custom_call.1} parent=0 // loop_header_branch
    %12 = sbr.rel (%p10) target = $region8
  $region5: #{tpu_custom_call.1} parent=0 // loop_body
    %s14 = ssub.s32 %s9, 1
    %s15 = ssub.s32 %s9, 2
    %s25 = sadd.s32 1, %s18
    %p26 = scmp.ge.s32.totalorder %s25, 1
    %s27 = scalar_select %p26, 0, %s25
    %s28 = sadd.s32 1, %s17
    %s29 = scalar_select %p26, %s28, %s17
    %p30 = scmp.ge.s32.totalorder %s29, 1
    %s31 = scalar_select %p30, 0, %s29
    %s32 = sadd.s32 1, %s16
    %s33 = scalar_select %p30, %s32, %s16
    %p34 = scmp.ge.s32.totalorder %s33, 7
    %s35 = scalar_select %p34, 0, %s33
    %s36 = ssub.s32 %s16, %s35
    %s37 = ssub.s32 %s18, %s27
    %s38 = sor.u32 %s36, %s37
    %p39 = scmp.eq.s32.totalorder %s38, 0
    %s41 = sadd.s32 %s40, 1
    %s42 = scalar_select %p39, %s40, %s41
    %p45 = pneg %p39
    %p46 = scmp.eq.s32.totalorder %s9, 6
    %p47 = por %p45, %p46
    %p48 = scmp.ne.s32.totalorder %s40, %s43
    %p49 = scmp.eq.s32.totalorder %s9, 0
    %p50 = por %p48, %p49
    %p51 = scmp.ne.s32.totalorder %s40, %s43
    %p52 = scmp.eq.s32.totalorder %s14, 6
    %p53 = por %p51, %p52
    %p54 = scmp.ne.s32.totalorder %s43, %s44
    %p55 = scmp.eq.s32.totalorder %s14, 0
    %p56 = por %p54, %p55
    %p57 = scmp.ne.s32.totalorder %s43, %s44
    %p58 = scmp.eq.s32.totalorder %s15, 6
    %p59 = por %p57, %p58
    %p61 = scmp.ne.s32.totalorder %s44, %s60
    %p62 = scmp.eq.s32.totalorder %s15, 0
    %p63 = por %p61, %p62
    %s64 = ssub.s32 %s18, %s27
    %s65 = ssub.s32 %s17, %s31
    %s66 = sor.u32 %s64, %s65
    %p67 = scmp.eq.s32.totalorder %s66, 0
    %s69 = sadd.s32 %s68, 1
    %s70 = scalar_select %p67, %s68, %s69
    %p73 = pneg %p67
    %p74 = scmp.eq.s32.totalorder %s9, 6
    %p75 = por %p73, %p74
    %p76 = scmp.ne.s32.totalorder %s68, %s71
    %p77 = scmp.eq.s32.totalorder %s9, 0
    %p78 = por %p76, %p77
    %p79 = scmp.ne.s32.totalorder %s68, %s71
    %p80 = scmp.eq.s32.totalorder %s14, 6
    %p81 = por %p79, %p80
    %p82 = scmp.ne.s32.totalorder %s71, %s72
    %p83 = scmp.eq.s32.totalorder %s14, 0
    %p84 = por %p82, %p83
    %p85 = scmp.ne.s32.totalorder %s71, %s72
    %p86 = scmp.eq.s32.totalorder %s15, 6
    %p87 = por %p85, %p86
    %p89 = scmp.ne.s32.totalorder %s72, %s88
    %p90 = scmp.eq.s32.totalorder %s15, 0
    %p91 = por %p89, %p90
    %s92 = ssub.s32 %s17, %s31
    %p93 = scmp.eq.s32.totalorder %s92, 0
    %s95 = sadd.s32 %s94, 1
    %s96 = scalar_select %p93, %s94, %s95
    %p99 = pneg %p93
    %p100 = scmp.eq.s32.totalorder %s9, 6
    %p101 = por %p99, %p100
    %p102 = scmp.ne.s32.totalorder %s94, %s97
    %p103 = scmp.eq.s32.totalorder %s9, 0
    %p104 = por %p102, %p103
    %p105 = scmp.ne.s32.totalorder %s94, %s97
    %p106 = scmp.eq.s32.totalorder %s14, 6
    %p107 = por %p105, %p106
    %p108 = scmp.ne.s32.totalorder %s97, %s98
    %p109 = scmp.eq.s32.totalorder %s14, 0
    %p110 = por %p108, %p109
    %p111 = scmp.ne.s32.totalorder %s97, %s98
    %p112 = scmp.eq.s32.totalorder %s15, 6
    %p113 = por %p111, %p112
    %p115 = scmp.ne.s32.totalorder %s98, %s114
    %p116 = scmp.eq.s32.totalorder %s15, 0
    %p117 = por %p115, %p116
    %s118 = ssub.s32 %s16, %s35
    %s119 = ssub.s32 %s17, %s31
    %s120 = sor.u32 %s118, %s119
    %p121 = scmp.eq.s32.totalorder %s120, 0
    %s123 = sadd.s32 %s122, 1
    %s124 = scalar_select %p121, %s122, %s123
    %p127 = pneg %p121
    %p128 = scmp.eq.s32.totalorder %s9, 6
    %p129 = por %p127, %p128
    %p130 = scmp.ne.s32.totalorder %s122, %s125
    %p131 = scmp.eq.s32.totalorder %s9, 0
    %p132 = por %p130, %p131
    %p133 = scmp.ne.s32.totalorder %s122, %s125
    %p134 = scmp.eq.s32.totalorder %s14, 6
    %p135 = por %p133, %p134
    %p136 = scmp.ne.s32.totalorder %s125, %s126
    %p137 = scmp.eq.s32.totalorder %s14, 0
    %p138 = por %p136, %p137
    %p139 = scmp.ne.s32.totalorder %s125, %s126
    %p140 = scmp.eq.s32.totalorder %s15, 6
    %p141 = por %p139, %p140
    %p143 = scmp.ne.s32.totalorder %s126, %s142
    %p144 = scmp.eq.s32.totalorder %s15, 0
    %p145 = por %p143, %p144
    %p146 = scmp.le.s32.totalorder 1, %s9
    %p147 = scmp.lt.s32.totalorder %s9, 8
    %p148 = pnand %p146, %p147
    %p149 = pneg %p148
    // Predicated region
    $region9: #{tpu_custom_call.1} parent=5 // pred_check
      _
    $region10: #{tpu_custom_call.1} parent=5 // pred_check_branch
      %151 = sbr.rel (%p148) target = $region12
    $region11: #{tpu_custom_call.1} parent=5 // pred_region
      %s152 = ssub.s32 %s9, 1
      // Predicated region
      $region13: #{tpu_custom_call.1} parent=11 // pred_check
        %p153 = pneg %p84
      $region14: #{tpu_custom_call.1} parent=11 // pred_check_branch
        %155 = sbr.rel (%p153) target = $region16
      $region15: #{tpu_custom_call.1} parent=11 // pred_region
        %s156 = smul.u32 2, %s21
        %p157 = scmp.lt.s32.totalorder %s156, 1
        %s158 = scalar_select %p157, %s156, 1
        %p159 = scmp.lt.s32.totalorder %s20, 0
        %s160 = scalar_select %p159, %s20, 0
        %s161 = sadd.s32 %s160, %s158
        %s162 = smul.addr %s161, 4
        %s163 = scalar_lea.vmem %s1, %s162
        %s164 = smul.u32 2, %s21
      $region16: #{tpu_custom_call.1} parent=11 // pred_fallthru
        _
      // Predicated region
      $region17: #{tpu_custom_call.1} parent=11 // pred_check
        %p165 = pneg %p110
      $region18: #{tpu_custom_call.1} parent=11 // pred_check_branch
        %167 = sbr.rel (%p165) target = $region20
      $region19: #{tpu_custom_call.1} parent=11 // pred_region
        %p168 = scmp.lt.s32.totalorder %s20, 0
        %s169 = scalar_select %p168, %s20, 0
        %s170 = scalar_lea.vmem %s2, %s169
      $region20: #{tpu_custom_call.1} parent=11 // pred_fallthru
        _
    $region12: #{tpu_custom_call.1} parent=5 // pred_fallthru
      _
    %p171 = scmp.lt.s32.totalorder %s9, 7
    // Predicated region
    $region21: #{tpu_custom_call.1} parent=5 // pred_check
      %p172 = pneg %p171
    $region22: #{tpu_custom_call.1} parent=5 // pred_check_branch
      %174 = sbr.rel (%p172) target = $region24
    $region23: #{tpu_custom_call.1} parent=5 // pred_region
      // Predicated region
      $region25: #{tpu_custom_call.1} parent=23 // pred_check
        %p175 = pneg %p50
      $region26: #{tpu_custom_call.1} parent=23 // pred_check_branch
        %177 = sbr.rel (%p175) target = $region28
      $region27: #{tpu_custom_call.1} parent=23 // pred_region
        %s178 = smul.u32 28, %s16
        %p179 = scmp.lt.s32.totalorder %s178, 195
        %s180 = scalar_select %p179, %s178, 195
        %p181 = scmp.lt.s32.totalorder %s18, 0
        %s182 = scalar_select %p181, %s18, 0
        %s183 = sadd.s32 %s182, %s180
        %s184 = smul.addr %s183, 4
        %s185 = scalar_lea.vmem %s0, %s184
        %s186 = smul.u32 28, %s16
      $region28: #{tpu_custom_call.1} parent=23 // pred_fallthru
        _
    $region24: #{tpu_custom_call.1} parent=5 // pred_fallthru
      _
    %p187 = scmp.le.s32.totalorder 1, %s9
    %p188 = scmp.lt.s32.totalorder %s9, 8
    %p189 = pnand %p187, %p188
    %p190 = pneg %p189
    // Predicated region
    $region29: #{tpu_custom_call.1} parent=5 // pred_check
      _
    $region30: #{tpu_custom_call.1} parent=5 // pred_check_branch
      %192 = sbr.rel (%p189) target = $region32
    $region31: #{tpu_custom_call.1} parent=5 // pred_region
      %s193 = ssub.s32 %s9, 1
      %s194 = smul.u32 28, %s19
      %p195 = scmp.lt.s32.totalorder %s194, 195
      %s196 = scalar_select %p195, %s194, 195
      %p197 = scmp.lt.s32.totalorder %s21, 0
      %s198 = scalar_select %p197, %s21, 0
      %s199 = sadd.s32 %s198, %s196
      %s200 = smul.addr %s199, 4
      %s201 = scalar_lea.vmem %s0, %s200
      %p202 = pneg %p56
      %p203 = pneg %p53
      %s204 = smul.u32 2, %s21
      %p205 = scmp.lt.s32.totalorder %s204, 1
      %s206 = scalar_select %p205, %s204, 1
      %p207 = scmp.lt.s32.totalorder %s20, 0
      %s208 = scalar_select %p207, %s20, 0
      %s209 = sadd.s32 %s208, %s206
      %s210 = smul.addr %s209, 4
      %s211 = scalar_lea.vmem %s1, %s210
      %p212 = pneg %p84
      %p213 = pneg %p81
      %p214 = scmp.lt.s32.totalorder %s20, 0
      %s215 = scalar_select %p214, %s20, 0
      %s216 = scalar_lea.vmem %s2, %s215
      %p217 = pneg %p110
      %p218 = pneg %p107
      %p219 = pneg %p138
      %p220 = pneg %p135
      %s221 = smul.u32 28, %s19
      %p222 = scmp.lt.s32.totalorder %s221, 195
      %s223 = scalar_select %p222, %s221, 195
      %p224 = scmp.lt.s32.totalorder %s20, 0
      %s225 = scalar_select %p224, %s20, 0
      %s226 = sadd.s32 %s225, %s223
      %s227 = smul.addr %s226, 4
      %s228 = scalar_lea.vmem %s3, %s227
      %s229 = smul.u32 28, %s19
      %p230 = scmp.lt.s32.totalorder %s229, 195
      %s231 = scalar_select %p230, %s229, 195
      %p232 = scmp.lt.s32.totalorder %s21, 0
      %s233 = scalar_select %p232, %s21, 0
      %s234 = sadd.s32 %s233, %s231
      %s235 = smul.addr %s234, 4
      %s236 = scalar_lea.vmem %s0, %s235
      %s237 = smul.u32 28, %s19
      %s238 = smul.u32 2, %s21
      %p239 = scmp.lt.s32.totalorder %s238, 1
      %s240 = scalar_select %p239, %s238, 1
      %p241 = scmp.lt.s32.totalorder %s20, 0
      %s242 = scalar_select %p241, %s20, 0
      %s243 = sadd.s32 %s242, %s240
      %s244 = smul.addr %s243, 4
      %s245 = scalar_lea.vmem %s1, %s244
      %s246 = smul.u32 2, %s21
      %p247 = scmp.lt.s32.totalorder %s20, 0
      %s248 = scalar_select %p247, %s20, 0
      %s249 = scalar_lea.vmem %s2, %s248
      %s250 = smul.u32 28, %s19
      %p251 = scmp.lt.s32.totalorder %s250, 195
      %s252 = scalar_select %p251, %s250, 195
      %p253 = scmp.lt.s32.totalorder %s20, 0
      %s254 = scalar_select %p253, %s20, 0
      %s255 = sadd.s32 %s254, %s252
      %s256 = smul.addr %s255, 4
      %s257 = scalar_lea.vmem %s3, %s256
      %s258 = smul.u32 28, %s19
      %v260 = vld [vmem:[%s236] sm:$0xf]
      %v261 = vld [vmem:[%s236 + $0x4] sm:$0xf]
      %v262 = vld [vmem:[%s236 + $0x8] sm:$0xf]
      %v263 = vld [vmem:[%s236 + $0xc] sm:$0xf]
      %v264 = vld [vmem:[%s236 + $0x10] sm:$0xf]
      %v265 = vld [vmem:[%s236 + $0x14] sm:$0xf]
      %v266 = vld [vmem:[%s236 + $0x18] sm:$0xf]
      %v267 = vld [vmem:[%s236 + $0x1c] sm:$0xf]
      %v268 = vld [vmem:[%s236 + $0x20] sm:$0xf]
      %v269 = vld [vmem:[%s236 + $0x24] sm:$0xf]
      %v270 = vld [vmem:[%s236 + $0x28] sm:$0xf]
      %v271 = vld [vmem:[%s236 + $0x2c] sm:$0xf]
      %v272 = vld [vmem:[%s236 + $0x30] sm:$0xf]
      %v273 = vld [vmem:[%s236 + $0x34] sm:$0xf]
      %v274 = vld [vmem:[%s236 + $0x38] sm:$0xf]
      %v275 = vld [vmem:[%s236 + $0x3c] sm:$0xf]
      %v276 = vld [vmem:[%s236 + $0x40] sm:$0xf]
      %v277 = vld [vmem:[%s236 + $0x44] sm:$0xf]
      %v278 = vld [vmem:[%s236 + $0x48] sm:$0xf]
      %v279 = vld [vmem:[%s236 + $0x4c] sm:$0xf]
      %v280 = vld [vmem:[%s236 + $0x50] sm:$0xf]
      %v281 = vld [vmem:[%s236 + $0x54] sm:$0xf]
      %v282 = vld [vmem:[%s236 + $0x58] sm:$0xf]
      %v283 = vld [vmem:[%s236 + $0x5c] sm:$0xf]
      %v284 = vld [vmem:[%s236 + $0x60] sm:$0xf]
      %v285 = vld [vmem:[%s236 + $0x64] sm:$0xf]
      %v286 = vld [vmem:[%s236 + $0x68] sm:$0xf]
      %v287 = vld [vmem:[%s236 + $0x6c] sm:$0xf]
      %v288 = vld [vmem:[%s245] sm:$0xf]
      %v289 = vld [vmem:[%s245 + $0x4] sm:$0x1]
      %v290 = vld [vmem:[%s249] sm:$0x1]
      %v292 = vlaneseq
      %v293 = vshrl.u32 %v292, 7
      %v294 = vsub.s32 0, %v293
      %v295 = vrot.slane %v290, %v294
      %v325 = vunpack.c.l.b16 %v260
      %v326 = vunpack.c.l.b16 %v261
      %v327 = vunpack.c.l.b16 %v262
      %v328 = vunpack.c.l.b16 %v263
      %v329 = vunpack.c.l.b16 %v264
      %v330 = vunpack.c.l.b16 %v265
      %v331 = vunpack.c.l.b16 %v266
      %v332 = vunpack.c.l.b16 %v267
      %v333 = vunpack.c.l.b16 %v268
      %v334 = vunpack.c.l.b16 %v269
      %v335 = vunpack.c.l.b16 %v270
      %v336 = vunpack.c.l.b16 %v271
      %v337 = vunpack.c.l.b16 %v272
      %v338 = vunpack.c.l.b16 %v273
      %v339 = vunpack.c.l.b16 %v274
      %v340 = vunpack.c.l.b16 %v275
      %v341 = vunpack.c.l.b16 %v276
      %v342 = vunpack.c.l.b16 %v277
      %v343 = vunpack.c.l.b16 %v278
      %v344 = vunpack.c.l.b16 %v279
      %v345 = vunpack.c.l.b16 %v280
      %v346 = vunpack.c.l.b16 %v281
      %v347 = vunpack.c.l.b16 %v282
      %v348 = vunpack.c.l.b16 %v283
      %v349 = vunpack.c.l.b16 %v284
      %v350 = vunpack.c.l.b16 %v285
      %v351 = vunpack.c.l.b16 %v286
      %v352 = vunpack.c.l.b16 %v287
      %v353 = vpack.c.b16 %v326, %v325
      %v354 = vpack.c.b16 %v328, %v327
      %v355 = vpack.c.b16 %v330, %v329
      %v356 = vpack.c.b16 %v332, %v331
      %v357 = vpack.c.b16 %v334, %v333
      %v358 = vpack.c.b16 %v336, %v335
      %v359 = vpack.c.b16 %v338, %v337
      %v360 = vpack.c.b16 %v340, %v339
      %v361 = vpack.c.b16 %v342, %v341
      %v362 = vpack.c.b16 %v344, %v343
      %v363 = vpack.c.b16 %v346, %v345
      %v364 = vpack.c.b16 %v348, %v347
      %v365 = vpack.c.b16 %v350, %v349
      %v366 = vpack.c.b16 %v352, %v351
      %v369 = vunpack.c.l.b16 %v288
      %v370 = vunpack.c.l.b16 %v289
      %v371 = vpack.c.b16 %v370, %v369
      %vm372 = vcmask 72704
      %v374 = vsel %vm372, %v353, 0
      %v377 = vsel %vm372, %v354, 0
      %v380 = vsel %vm372, %v355, 0
      %v383 = vsel %vm372, %v356, 0
      %v386 = vsel %vm372, %v357, 0
      %v389 = vsel %vm372, %v358, 0
      %v392 = vsel %vm372, %v359, 0
      %v395 = vsel %vm372, %v360, 0
      %v398 = vsel %vm372, %v361, 0
      %v401 = vsel %vm372, %v362, 0
      %v404 = vsel %vm372, %v363, 0
      %v407 = vsel %vm372, %v364, 0
      %v410 = vsel %vm372, %v365, 0
      %v413 = vsel %vm372, %v366, 0
      %vm415 = vcmask 1043456
      %vm416 = vcmask 1044480
      %v417 = vsel %vm415, 4294967295, 65535
      %v418 = vsel %vm416, %v417, 0
      %v420 = vand.u32 %v371, %v418
      %422 = vmatprep.subr.bf16.mxu0 0
      %423 = vmatpush1.bf16.msra.mxu0 %v420
      %424 = vmatprep.subr.bf16.mxu0 0
      %425 = vmatpush1.bf16.msra.mxu0 0
      %426 = vmatprep.subr.bf16.mxu0 0
      %427 = vmatpush1.bf16.msra.mxu0 0
      %428 = vmatprep.subr.bf16.mxu0 0
      %429 = vmatpush1.bf16.msra.mxu0 0
      %430 = vmatprep.subr.bf16.mxu0 0
      %431 = vmatpush1.bf16.msra.mxu0 0
      %432 = vmatprep.subr.bf16.mxu0 0
      %433 = vmatpush1.bf16.msra.mxu0 0
      %434 = vmatprep.subr.bf16.mxu0 0
      %435 = vmatpush1.bf16.msra.mxu0 0
      %436 = vmatprep.subr.bf16.mxu0 0
      %437 = vmatpush1.bf16.msra.mxu0 0
      %438 = vmatprep.subr.bf16.mxu0 0
      %439 = vmatpush1.bf16.msra.mxu0 0
      %440 = vmatprep.subr.bf16.mxu0 0
      %441 = vmatpush1.bf16.msra.mxu0 0
      %442 = vmatprep.subr.bf16.mxu0 0
      %443 = vmatpush1.bf16.msra.mxu0 0
      %444 = vmatprep.subr.bf16.mxu0 0
      %445 = vmatpush1.bf16.msra.mxu0 0
      %446 = vmatprep.subr.bf16.mxu0 0
      %447 = vmatpush1.bf16.msra.mxu0 0
      %448 = vmatprep.subr.bf16.mxu0 0
      %449 = vmatpush1.bf16.msra.mxu0 0
      %450 = vmatprep.subr.bf16.mxu0 0
      %451 = vmatpush1.bf16.msra.mxu0 0
      %452 = vmatprep.subr.bf16.mxu0 0
      %453 = vmatpush1.bf16.msra.mxu0 0
      %454 = vmatprep.mubr.bf16.mxu0 0
      %455 = vmatmul.mubr.bf16.gmra.mrb[0].mxu0 %v374
      %v456 = vpop.f32.mrb[0].mxu0
      %v457 = vadd.f32 %v295, %v456
      %v458 = vpop.f32.mrb[0].mxu0
      %v459 = vpop.f32.mrb[0].mxu0
      %v460 = vadd.f32 %v295, %v459
      %v461 = vpop.f32.mrb[0].mxu0
      %462 = vmatprep.mubr.bf16.mxu0 0
      %463 = vmatmul.mubr.bf16.gmra.mrb[0].mxu0 %v377
      %v464 = vpop.f32.mrb[0].mxu0
      %v465 = vadd.f32 %v295, %v464
      %v466 = vpop.f32.mrb[0].mxu0
      %v467 = vpop.f32.mrb[0].mxu0
      %v468 = vadd.f32 %v295, %v467
      %v469 = vpop.f32.mrb[0].mxu0
      %470 = vmatprep.mubr.bf16.mxu0 0
      %471 = vmatmul.mubr.bf16.gmra.mrb[0].mxu0 %v380
      %v472 = vpop.f32.mrb[0].mxu0
      %v473 = vadd.f32 %v295, %v472
      %v474 = vpop.f32.mrb[0].mxu0
      %v475 = vpop.f32.mrb[0].mxu0
      %v476 = vadd.f32 %v295, %v475
      %v477 = vpop.f32.mrb[0].mxu0
      %478 = vmatprep.mubr.bf16.mxu0 0
      %479 = vmatmul.mubr.bf16.gmra.mrb[0].mxu0 %v383
      %v480 = vpop.f32.mrb[0].mxu0
      %v481 = vadd.f32 %v295, %v480
      %v482 = vpop.f32.mrb[0].mxu0
      %v483 = vpop.f32.mrb[0].mxu0
      %v484 = vadd.f32 %v295, %v483
      %v485 = vpop.f32.mrb[0].mxu0
      %486 = vmatprep.mubr.bf16.mxu0 0
      %487 = vmatmul.mubr.bf16.gmra.mrb[0].mxu0 %v386
      %v488 = vpop.f32.mrb[0].mxu0
      %v489 = vadd.f32 %v295, %v488
      %v490 = vpop.f32.mrb[0].mxu0
      %v491 = vpop.f32.mrb[0].mxu0
      %v492 = vadd.f32 %v295, %v491
      %v493 = vpop.f32.mrb[0].mxu0
      %494 = vmatprep.mubr.bf16.mxu0 0
      %495 = vmatmul.mubr.bf16.gmra.mrb[0].mxu0 %v389
      %v496 = vpop.f32.mrb[0].mxu0
      %v497 = vadd.f32 %v295, %v496
      %v498 = vpop.f32.mrb[0].mxu0
      %v499 = vpop.f32.mrb[0].mxu0
      %v500 = vadd.f32 %v295, %v499
      %v501 = vpop.f32.mrb[0].mxu0
      %502 = vmatprep.mubr.bf16.mxu0 0
      %503 = vmatmul.mubr.bf16.gmra.mrb[0].mxu0 %v392
      %v504 = vpop.f32.mrb[0].mxu0
      %v505 = vadd.f32 %v295, %v504
      %v506 = vpop.f32.mrb[0].mxu0
      %v507 = vpop.f32.mrb[0].mxu0
      %v508 = vadd.f32 %v295, %v507
      %v509 = vpop.f32.mrb[0].mxu0
      %510 = vmatprep.mubr.bf16.mxu0 0
      %511 = vmatmul.mubr.bf16.gmra.mrb[0].mxu0 %v395
      %v512 = vpop.f32.mrb[0].mxu0
      %v513 = vadd.f32 %v295, %v512
      %v514 = vpop.f32.mrb[0].mxu0
      %v515 = vpop.f32.mrb[0].mxu0
      %v516 = vadd.f32 %v295, %v515
      %v517 = vpop.f32.mrb[0].mxu0
      %518 = vmatprep.mubr.bf16.mxu0 0
      %519 = vmatmul.mubr.bf16.gmra.mrb[0].mxu0 %v398
      %v520 = vpop.f32.mrb[0].mxu0
      %v521 = vadd.f32 %v295, %v520
      %v522 = vpop.f32.mrb[0].mxu0
      %v523 = vpop.f32.mrb[0].mxu0
      %v524 = vadd.f32 %v295, %v523
      %v525 = vpop.f32.mrb[0].mxu0
      %526 = vmatprep.mubr.bf16.mxu0 0
      %527 = vmatmul.mubr.bf16.gmra.mrb[0].mxu0 %v401
      %v528 = vpop.f32.mrb[0].mxu0
      %v529 = vadd.f32 %v295, %v528
      %v530 = vpop.f32.mrb[0].mxu0
      %v531 = vpop.f32.mrb[0].mxu0
      %v532 = vadd.f32 %v295, %v531
      %v533 = vpop.f32.mrb[0].mxu0
      %534 = vmatprep.mubr.bf16.mxu0 0
      %535 = vmatmul.mubr.bf16.gmra.mrb[0].mxu0 %v404
      %v536 = vpop.f32.mrb[0].mxu0
      %v537 = vadd.f32 %v295, %v536
      %v538 = vpop.f32.mrb[0].mxu0
      %v539 = vpop.f32.mrb[0].mxu0
      %v540 = vadd.f32 %v295, %v539
      %v541 = vpop.f32.mrb[0].mxu0
      %542 = vmatprep.mubr.bf16.mxu0 0
      %543 = vmatmul.mubr.bf16.gmra.mrb[0].mxu0 %v407
      %v544 = vpop.f32.mrb[0].mxu0
      %v545 = vadd.f32 %v295, %v544
      %v546 = vpop.f32.mrb[0].mxu0
      %v547 = vpop.f32.mrb[0].mxu0
      %v548 = vadd.f32 %v295, %v547
      %v549 = vpop.f32.mrb[0].mxu0
      %550 = vmatprep.mubr.bf16.mxu0 0
      %551 = vmatmul.mubr.bf16.gmra.mrb[0].mxu0 %v410
      %v552 = vpop.f32.mrb[0].mxu0
      %v553 = vadd.f32 %v295, %v552
      %v554 = vpop.f32.mrb[0].mxu0
      %v555 = vpop.f32.mrb[0].mxu0
      %v556 = vadd.f32 %v295, %v555
      %v557 = vpop.f32.mrb[0].mxu0
      %558 = vmatprep.mubr.bf16.mxu0 0
      %559 = vmatmul.mubr.bf16.gmra.mrb[0].mxu0 %v413
      %v560 = vpop.f32.mrb[0].mxu0
      %v561 = vadd.f32 %v295, %v560
      %v562 = vpop.f32.mrb[0].mxu0
      %v563 = vpop.f32.mrb[0].mxu0
      %v564 = vadd.f32 %v295, %v563
      %v565 = vpop.f32.mrb[0].mxu0
      %566 = vdwg.mxu0
      %v567 = vmax.f32 %v457, 0.0
      %v568 = vmax.f32 %v460, 0.0
      %v569 = vmax.f32 %v465, 0.0
      %v570 = vmax.f32 %v468, 0.0
      %v571 = vmax.f32 %v473, 0.0
      %v572 = vmax.f32 %v476, 0.0
      %v573 = vmax.f32 %v481, 0.0
      %v574 = vmax.f32 %v484, 0.0
      %v575 = vmax.f32 %v489, 0.0
      %v576 = vmax.f32 %v492, 0.0
      %v577 = vmax.f32 %v497, 0.0
      %v578 = vmax.f32 %v500, 0.0
      %v579 = vmax.f32 %v505, 0.0
      %v580 = vmax.f32 %v508, 0.0
      %v581 = vmax.f32 %v513, 0.0
      %v582 = vmax.f32 %v516, 0.0
      %v583 = vmax.f32 %v521, 0.0
      %v584 = vmax.f32 %v524, 0.0
      %v585 = vmax.f32 %v529, 0.0
      %v586 = vmax.f32 %v532, 0.0
      %v587 = vmax.f32 %v537, 0.0
      %v588 = vmax.f32 %v540, 0.0
      %v589 = vmax.f32 %v545, 0.0
      %v590 = vmax.f32 %v548, 0.0
      %v591 = vmax.f32 %v553, 0.0
      %v592 = vmax.f32 %v556, 0.0
      %v593 = vmax.f32 %v561, 0.0
      %v594 = vmax.f32 %v564, 0.0
      %v595 = vpack.c.bf16 %v568, %v567
      %v596 = vpack.c.bf16 %v570, %v569
      %v597 = vpack.c.bf16 %v572, %v571
      %v598 = vpack.c.bf16 %v574, %v573
      %v599 = vpack.c.bf16 %v576, %v575
      %v600 = vpack.c.bf16 %v578, %v577
      %v601 = vpack.c.bf16 %v580, %v579
      %v602 = vpack.c.bf16 %v582, %v581
      %v603 = vpack.c.bf16 %v584, %v583
      %v604 = vpack.c.bf16 %v586, %v585
      %v605 = vpack.c.bf16 %v588, %v587
      %v606 = vpack.c.bf16 %v590, %v589
      %v607 = vpack.c.bf16 %v592, %v591
      %v608 = vpack.c.bf16 %v594, %v593
      %v623 = vunpack.c.l.b16 %v595
      %v624 = vunpack.c.h.b16 %v595
      %v625 = vunpack.c.l.b16 %v596
      %v626 = vunpack.c.h.b16 %v596
      %v627 = vunpack.c.l.b16 %v597
      %v628 = vunpack.c.h.b16 %v597
      %v629 = vunpack.c.l.b16 %v598
      %v630 = vunpack.c.h.b16 %v598
      %v631 = vunpack.c.l.b16 %v599
      %v632 = vunpack.c.h.b16 %v599
      %v633 = vunpack.c.l.b16 %v600
      %v634 = vunpack.c.h.b16 %v600
      %v635 = vunpack.c.l.b16 %v601
      %v636 = vunpack.c.h.b16 %v601
      %v637 = vunpack.c.l.b16 %v602
      %v638 = vunpack.c.h.b16 %v602
      %v639 = vunpack.c.l.b16 %v603
      %v640 = vunpack.c.h.b16 %v603
      %v641 = vunpack.c.l.b16 %v604
      %v642 = vunpack.c.h.b16 %v604
      %v643 = vunpack.c.l.b16 %v605
      %v644 = vunpack.c.h.b16 %v605
      %v645 = vunpack.c.l.b16 %v606
      %v646 = vunpack.c.h.b16 %v606
      %v647 = vunpack.c.l.b16 %v607
      %v648 = vunpack.c.h.b16 %v607
      %v649 = vunpack.c.l.b16 %v608
      %v650 = vunpack.c.h.b16 %v608
      %v651 = vpack.c.b16 %v623, %v623
      %v652 = vpack.c.b16 %v624, %v624
      %v653 = vpack.c.b16 %v625, %v625
      %v654 = vpack.c.b16 %v626, %v626
      %v655 = vpack.c.b16 %v627, %v627
      %v656 = vpack.c.b16 %v628, %v628
      %v657 = vpack.c.b16 %v629, %v629
      %v658 = vpack.c.b16 %v630, %v630
      %v659 = vpack.c.b16 %v631, %v631
      %v660 = vpack.c.b16 %v632, %v632
      %v661 = vpack.c.b16 %v633, %v633
      %v662 = vpack.c.b16 %v634, %v634
      %v663 = vpack.c.b16 %v635, %v635
      %v664 = vpack.c.b16 %v636, %v636
      %v665 = vpack.c.b16 %v637, %v637
      %v666 = vpack.c.b16 %v638, %v638
      %v667 = vpack.c.b16 %v639, %v639
      %v668 = vpack.c.b16 %v640, %v640
      %v669 = vpack.c.b16 %v641, %v641
      %v670 = vpack.c.b16 %v642, %v642
      %v671 = vpack.c.b16 %v643, %v643
      %v672 = vpack.c.b16 %v644, %v644
      %v673 = vpack.c.b16 %v645, %v645
      %v674 = vpack.c.b16 %v646, %v646
      %v675 = vpack.c.b16 %v647, %v647
      %v676 = vpack.c.b16 %v648, %v648
      %v677 = vpack.c.b16 %v649, %v649
      %v678 = vpack.c.b16 %v650, %v650
      %vm707 = vcmask 257024
      %708 = vst.msk [vmem:[%s257] sm:$0xf] %vm707, %v651
      %709 = vst.msk [vmem:[%s257 + $0x4] sm:$0xf] %vm707, %v652
      %710 = vst.msk [vmem:[%s257 + $0x8] sm:$0xf] %vm707, %v653
      %711 = vst.msk [vmem:[%s257 + $0xc] sm:$0xf] %vm707, %v654
      %712 = vst.msk [vmem:[%s257 + $0x10] sm:$0xf] %vm707, %v655
      %713 = vst.msk [vmem:[%s257 + $0x14] sm:$0xf] %vm707, %v656
      %714 = vst.msk [vmem:[%s257 + $0x18] sm:$0xf] %vm707, %v657
      %715 = vst.msk [vmem:[%s257 + $0x1c] sm:$0xf] %vm707, %v658
      %716 = vst.msk [vmem:[%s257 + $0x20] sm:$0xf] %vm707, %v659
      %717 = vst.msk [vmem:[%s257 + $0x24] sm:$0xf] %vm707, %v660
      %718 = vst.msk [vmem:[%s257 + $0x28] sm:$0xf] %vm707, %v661
      %719 = vst.msk [vmem:[%s257 + $0x2c] sm:$0xf] %vm707, %v662
      %720 = vst.msk [vmem:[%s257 + $0x30] sm:$0xf] %vm707, %v663
      %721 = vst.msk [vmem:[%s257 + $0x34] sm:$0xf] %vm707, %v664
      %722 = vst.msk [vmem:[%s257 + $0x38] sm:$0xf] %vm707, %v665
      %723 = vst.msk [vmem:[%s257 + $0x3c] sm:$0xf] %vm707, %v666
      %724 = vst.msk [vmem:[%s257 + $0x40] sm:$0xf] %vm707, %v667
      %725 = vst.msk [vmem:[%s257 + $0x44] sm:$0xf] %vm707, %v668
      %726 = vst.msk [vmem:[%s257 + $0x48] sm:$0xf] %vm707, %v669
      %727 = vst.msk [vmem:[%s257 + $0x4c] sm:$0xf] %vm707, %v670
      %728 = vst.msk [vmem:[%s257 + $0x50] sm:$0xf] %vm707, %v671
      %729 = vst.msk [vmem:[%s257 + $0x54] sm:$0xf] %vm707, %v672
      %730 = vst.msk [vmem:[%s257 + $0x58] sm:$0xf] %vm707, %v673
      %731 = vst.msk [vmem:[%s257 + $0x5c] sm:$0xf] %vm707, %v674
      %732 = vst.msk [vmem:[%s257 + $0x60] sm:$0xf] %vm707, %v675
      %733 = vst.msk [vmem:[%s257 + $0x64] sm:$0xf] %vm707, %v676
      %734 = vst.msk [vmem:[%s257 + $0x68] sm:$0xf] %vm707, %v677
      %735 = vst.msk [vmem:[%s257 + $0x6c] sm:$0xf] %vm707, %v678
      %s736 = smul.u32 28, %s19
      %p737 = scmp.lt.s32.totalorder %s736, 195
      %s738 = scalar_select %p737, %s736, 195
      %p739 = scmp.lt.s32.totalorder %s20, 0
      %s740 = scalar_select %p739, %s20, 0
      %s741 = sadd.s32 %s740, %s738
      %s742 = smul.addr %s741, 4
      %s743 = scalar_lea.vmem %s3, %s742
      // Predicated region
      $region33: #{tpu_custom_call.1} parent=31 // pred_check
        %p744 = pneg %p135
      $region34: #{tpu_custom_call.1} parent=31 // pred_check_branch
        %746 = sbr.rel (%p744) target = $region36
      $region35: #{tpu_custom_call.1} parent=31 // pred_region
        %s747 = smul.u32 28, %s19
      $region36: #{tpu_custom_call.1} parent=31 // pred_fallthru
        _
    $region32: #{tpu_custom_call.1} parent=5 // pred_fallthru
      _
    %p748 = scmp.le.s32.totalorder 2, %s9
    // Predicated region
    $region37: #{tpu_custom_call.1} parent=5 // pred_check
      %p749 = pneg %p748
    $region38: #{tpu_custom_call.1} parent=5 // pred_check_branch
      %751 = sbr.rel (%p749) target = $region40
    $region39: #{tpu_custom_call.1} parent=5 // pred_region
      %s752 = ssub.s32 %s9, 2
      // Predicated region
      $region41: #{tpu_custom_call.1} parent=39 // pred_check
        %p753 = pneg %p141
      $region42: #{tpu_custom_call.1} parent=39 // pred_check_branch
        %755 = sbr.rel (%p753) target = $region44
      $region43: #{tpu_custom_call.1} parent=39 // pred_region
        %s756 = smul.u32 28, %s22
        %p757 = scmp.lt.s32.totalorder %s756, 195
        %s758 = scalar_select %p757, %s756, 195
        %p759 = scmp.lt.s32.totalorder %s23, 0
        %s760 = scalar_select %p759, %s23, 0
        %s761 = sadd.s32 %s760, %s758
        %s762 = smul.addr %s761, 4
        %s763 = scalar_lea.vmem %s3, %s762
      $region44: #{tpu_custom_call.1} parent=39 // pred_fallthru
        _
    $region40: #{tpu_custom_call.1} parent=5 // pred_fallthru
      _
  $region6: #{tpu_custom_call.1} parent=0 // loop_footer
    %s13 = sadd.s32 1, %s9
  $region7: #{tpu_custom_call.1} parent=0 // loop_footer_branch
    %8 = sbr.rel target = $region3
  $region8: #{tpu_custom_call.1} parent=0 // loop_exit
    _

</llo_original>
